<compile_context>
chip_gen: v6e
topology: v6e:2x2x1
jax: 0.10.0
libtpu: 0.0.40
codegen_flags: <defaults>
</compile_context>

<pallas_src>
import functools
import math

import numpy as np
import jax
import jax.numpy as jnp
from jax import lax
from jax.experimental import pallas as pl
from jax.experimental.pallas import tpu as pltpu


def _sin_pos_emb_kernel(x_ref, sel_ref, freq_ref, phase_ref, o_ref):
    # x_ref   : (bn, P)  packed positions (f32)
    # sel_ref : (P, W)   0/1 selection matrix, sel[p, l] = (l // dim == p)
    # freq_ref: (1, W)   freq[l % dim] (second half repeats the first half)
    # phase_ref:(1, W)   0 for sin lanes, pi/2 for cos lanes
    x = x_ref[...]

    # Replicate each packed position across its `dim` lanes on the MXU.
    # HIGHEST precision + 0/1 matrix -> e is exactly x broadcast per lane.
    e = jnp.dot(x, sel_ref[...],
                preferred_element_type=jnp.float32,
                precision=jax.lax.Precision.HIGHEST)      # (bn, W)

    # Exact f32 multiply by the per-lane frequency (matches reference x*freq),
    # then one transcendental per lane: cos(e) == sin(e + pi/2).
    o_ref[...] = jnp.sin(e * freq_ref[...] + phase_ref[...]).astype(o_ref.dtype)


def sinusoidal_pos_emb(x: jax.Array, dim: int = 16, M: float = 10000.0,
                       max_block_rows: int = 2048,
                       out_dtype=jnp.float32) -> jax.Array:
    """Pallas TPU implementation of SinusoidalPosEmb.forward."""
    if dim < 2 or dim % 2 != 0:
        raise ValueError(f"dim must be even and >= 2, got {dim}")
    half = dim // 2

    orig_shape = x.shape
    flat = x.reshape(-1).astype(jnp.float32)
    n = int(flat.shape[0])
    if n == 0:
        return jnp.zeros((*orig_shape, dim), out_dtype)

    # Lane-dense packing of the contiguous (N, dim) output: (N // P, W),
    # W a multiple of 128 (W == 128, P == 8 for the default dim=16).
    W = dim * (128 // math.gcd(dim, 128))        # lcm(dim, 128)
    P = W // dim

    # Pad only to a multiple of P (<= P-1 elements; no-op for typical sizes).
    n_pad = pl.cdiv(n, P) * P
    if n_pad != n:
        flat = jnp.pad(flat, (0, n_pad - n))
    n_rows = n_pad // P
    x_packed = flat.reshape(n_rows, P)

    # Row tiling: multiple of 8 (or the full, small array), and at least two
    # grid steps when there is enough work so v7x's two TCs both get a share.
    if n_rows <= 8:
        block_rows = n_rows                         # single full block
    else:
        block_rows = min(max_block_rows,
                         ((pl.cdiv(n_rows, 2) + 7) // 8) * 8)
    steps = pl.cdiv(n_rows, block_rows)             # ragged final block is OK

    # Host-built constant tables (DMA'd once; stay VMEM-resident via the
    # constant index_map below).
    lane = np.arange(W)
    feat = lane % dim
    pos = lane // dim
    k = np.where(feat >= half, feat - half, feat).astype(np.float32)
    freq = np.exp(k * (-math.log(M) / half)).astype(np.float32)[None, :]   # (1, W)
    phase = np.where(feat >= half, np.float32(math.pi / 2),
                     np.float32(0.0)).astype(np.float32)[None, :]          # (1, W)
    sel = (pos[None, :] == np.arange(P)[:, None]).astype(np.float32)       # (P, W)

    cost = pl.CostEstimate(
        flops=n_pad * dim * (2 * P + 2),            # tiny matmul + 2 VPU ops
        transcendentals=n_pad * dim,                # one sin per output elem
        bytes_accessed=4 * n_pad + n_pad * dim * jnp.dtype(out_dtype).itemsize,
    )

    out = pl.pallas_call(
        _sin_pos_emb_kernel,
        out_shape=jax.ShapeDtypeStruct((n_rows, W), out_dtype),
        grid_spec=pltpu.PrefetchScalarGridSpec(
            num_scalar_prefetch=0,
            grid=(steps,),
            in_specs=[
                pl.BlockSpec((block_rows, P), lambda i: (i, 0)),   # x (packed)
                pl.BlockSpec((P, W), lambda i: (0, 0)),            # sel (resident)
                pl.BlockSpec((1, W), lambda i: (0, 0)),            # freq (resident)
                pl.BlockSpec((1, W), lambda i: (0, 0)),            # phase (resident)
            ],
            out_specs=pl.BlockSpec((block_rows, W), lambda i: (i, 0)),
        ),
        compiler_params=pltpu.CompilerParams(
            dimension_semantics=("parallel",)),
        cost_estimate=cost,
    )(x_packed, jnp.asarray(sel), jnp.asarray(freq), jnp.asarray(phase))

    # Free reshape back to (N, dim) (identical contiguous layout); slice only
    # if we actually padded (never for n % P == 0).
    out = out.reshape(n_pad, dim)
    if n_pad != n:
        out = out[:n]
    return out.reshape(*orig_shape, dim)


def _reference(x, dim=16, M=10000.0):
    half = dim // 2
    freqs = jnp.exp(jnp.arange(half, dtype=jnp.float32) * (-math.log(M) / half))
    e = x[..., None].astype(jnp.float32) * freqs
    return jnp.concatenate([jnp.sin(e), jnp.cos(e)], axis=-1)


if __name__ == "__main__":
    key = jax.random.PRNGKey(0)
    # batch of 2 sequences of 64 scalar positions -> output (2, 64, 16)
    x = jax.random.uniform(key, (2, 64), dtype=jnp.float32) * 100.0

    out = sinusoidal_pos_emb(x, dim=16, M=10000.0)
    out = jax.block_until_ready(out)

    ref = _reference(x, dim=16, M=10000.0)
    assert out.shape == (2, 64, 16), out.shape
    # cos is evaluated as sin(e + pi/2); allow a few ulp of slack at |e| ~ 100.
    assert jnp.allclose(out, ref, atol=1e-4, rtol=1e-4), "mismatch vs reference"

    print("KERNEL_OK")
</pallas_src>

<mosaic_0001>
module attributes {stable_mosaic.version = 11 : i64} {
  func.func @_sin_pos_emb_kernel(%arg0: i32, %arg1: memref<8x8xf32, #tpu.memory_space<vmem>>, %arg2: memref<8x128xf32, #tpu.memory_space<vmem>>, %arg3: memref<1x128xf32, #tpu.memory_space<vmem>>, %arg4: memref<1x128xf32, #tpu.memory_space<vmem>>, %arg5: memref<8x128xf32, #tpu.memory_space<vmem>>) attributes {dimension_semantics = [#tpu.dimension_semantics<parallel>], iteration_bounds = array<i64: 2>, scalar_prefetch = 0 : i64, scratch_operands = 0 : i64, tpu.core_type = #tpu.core_type<tc>, window_params = [{transform_indices = @transform_0, window_bounds = array<i64: 8, 8>}, {pipeline_mode = #tpu.pipeline_mode<synchronous>, transform_indices = @transform_1, window_bounds = array<i64: 8, 128>}, {pipeline_mode = #tpu.pipeline_mode<synchronous>, transform_indices = @transform_2, window_bounds = array<i64: 1, 128>}, {pipeline_mode = #tpu.pipeline_mode<synchronous>, transform_indices = @transform_3, window_bounds = array<i64: 1, 128>}, {transform_indices = @transform_4, window_bounds = array<i64: 8, 128>}]} {
    %c0 = arith.constant 0 : index
    %c0_0 = arith.constant 0 : index
    %0 = vector.load %arg1[%c0, %c0_0] : memref<8x8xf32, #tpu.memory_space<vmem>>, vector<8x8xf32>
    %c0_1 = arith.constant 0 : index
    %c0_2 = arith.constant 0 : index
    %1 = vector.load %arg2[%c0_1, %c0_2] : memref<8x128xf32, #tpu.memory_space<vmem>>, vector<8x128xf32>
    %cst = arith.constant dense<0.000000e+00> : vector<8x128xf32>
    %2 = tpu.matmul %0, %1, %cst {dimension_numbers = #tpu.dot_dimension_numbers<[1], [0], [0], [1], [0, 0, 1, 1], [], []>, precision = #tpu.contract_precision<fp32>} : vector<8x8xf32>, vector<8x128xf32>, vector<8x128xf32> -> vector<8x128xf32>
    %c0_3 = arith.constant 0 : index
    %c0_4 = arith.constant 0 : index
    %3 = vector.load %arg3[%c0_3, %c0_4] : memref<1x128xf32, #tpu.memory_space<vmem>>, vector<1x128xf32>
    %4 = vector.broadcast %3 : vector<1x128xf32> to vector<8x128xf32>
    %5 = arith.mulf %2, %4 : vector<8x128xf32>
    %c0_5 = arith.constant 0 : index
    %c0_6 = arith.constant 0 : index
    %6 = vector.load %arg4[%c0_5, %c0_6] : memref<1x128xf32, #tpu.memory_space<vmem>>, vector<1x128xf32>
    %7 = vector.broadcast %6 : vector<1x128xf32> to vector<8x128xf32>
    %8 = arith.addf %5, %7 : vector<8x128xf32>
    %9 = math.sin %8 : vector<8x128xf32>
    %c0_7 = arith.constant 0 : index
    %c0_8 = arith.constant 0 : index
    %10 = vector.load %arg5[%c0_7, %c0_8] : memref<8x128xf32, #tpu.memory_space<vmem>>, vector<8x128xf32>
    tpu.vector_store %arg5[%c0_7, %c0_8], %9 {strides = array<i32>} : memref<8x128xf32, #tpu.memory_space<vmem>>, vector<8x128xf32>,
    return
  }
  func.func @transform_0(%arg0: i32) -> (i32, i32) {
    %c0_i32 = arith.constant 0 : i32
    %c0_i32_0 = arith.constant 0 : i32
    return %arg0, %c0_i32 : i32, i32
  }
  func.func @transform_1(%arg0: i32) -> (i32, i32) {
    %c0_i32 = arith.constant 0 : i32
    %c0_i32_0 = arith.constant 0 : i32
    %c0_i32_1 = arith.constant 0 : i32
    return %c0_i32, %c0_i32_0 : i32, i32
  }
  func.func @transform_2(%arg0: i32) -> (i32, i32) {
    %c0_i32 = arith.constant 0 : i32
    %c0_i32_0 = arith.constant 0 : i32
    %c0_i32_1 = arith.constant 0 : i32
    return %c0_i32, %c0_i32_0 : i32, i32
  }
  func.func @transform_3(%arg0: i32) -> (i32, i32) {
    %c0_i32 = arith.constant 0 : i32
    %c0_i32_0 = arith.constant 0 : i32
    %c0_i32_1 = arith.constant 0 : i32
    return %c0_i32, %c0_i32_0 : i32, i32
  }
  func.func @transform_4(%arg0: i32) -> (i32, i32) {
    %c0_i32 = arith.constant 0 : i32
    %c0_i32_0 = arith.constant 0 : i32
    return %arg0, %c0_i32 : i32, i32
  }
}

</mosaic_0001>

<llo_original>
// kernel: tpu_custom_call.1
$region0: #{tpu_custom_call.1}
  #allocation0 [shape = 'u32[]', space=smem, size = 0x4, offset = 0x4, fixed_abs, tag = 'smem constant byte address 0x4 - core index']
  #allocation1 [shape = 'u32[144,128]{1,0:T(1,128)}', space=vmem, size = 0x12000, scoped, tag = 'internal scratch']
  %s0 = inlined_call_operand.vmem [shape: f32[16,8], index: 0, kind: input, shape index: {}]
  %s1 = inlined_call_operand.vmem [shape: f32[8,128], index: 1, kind: input, shape index: {}]
  %s2 = inlined_call_operand.vmem [shape: f32[1,128], index: 2, kind: input, shape index: {}]
  %s3 = inlined_call_operand.vmem [shape: f32[1,128], index: 3, kind: input, shape index: {}]
  %s4 = inlined_call_operand.hbm [shape: f32[16,128], index: 4, kind: output, shape index: {}]
  %s5 = sld [smem:[#allocation0]]
  $region49: #{tpu_custom_call.1} parent=0
    _
  %s7 = ssub.s32 1, %s5
  %s8 = scalar_select 0, %s7, %s5
  $region1: #{tpu_custom_call.1} parent=0
    #allocation2 [shape = 'u8[8192]{0}', space=vmem, size = 0x2000, scoped, tag = 'output window, operand 0']
    #allocation3 [shape = 's32[2]{0}', space=sflag, size = 0x8, scoped, tag = 'scoped memory for tpu_custom_call.1']
    %9 = vsyncpa [#allocation3], 0
    %s10 = scalar_lea.sflag [#allocation3], 1
    %11 = vsyncpa %s10, 0
    loop: start=0, step=1, limit=4
    $region2: #{tpu_custom_call.1} parent=1 // loop_pre_header
      _
    $region3: #{tpu_custom_call.1} parent=1 // loop_header
      %s13 = sphi 0, %s17
      %p14 = scmp.ge.s32.totalorder %s13, 4
      %s23 = sphi 0, %s25
      %s26 = sphi 0, %s23
      %s27 = sphi 0, %s26
      %s43 = sphi 0, %s27
      %s47 = sphi 0, %s47
      %s49 = sphi 0, %s47
      %s50 = sphi 0, %s49
      %s64 = sphi 0, %s50
      %s68 = sphi 0, %s68
      %s70 = sphi 0, %s68
      %s71 = sphi 0, %s70
      %s85 = sphi 0, %s71
      %s89 = sphi 0, %s89
      %s91 = sphi 0, %s89
      %s92 = sphi 0, %s91
      %s106 = sphi 0, %s92
      %s112 = sphi 0, %s114
      %s115 = sphi 0, %s112
      %s116 = sphi 0, %s115
      %s132 = sphi 0, %s116
    $region4: #{tpu_custom_call.1} parent=1 // loop_header_branch
      %16 = sbr.rel (%p14) target = $region8
    $region5: #{tpu_custom_call.1} parent=1 // loop_body
      %s18 = ssub.s32 %s13, 1
      %s19 = ssub.s32 %s13, 2
      %s20 = sadd.s32 %s13, 1
      %s21 = ssub.s32 %s13, %s20
      %p22 = scmp.eq.s32.totalorder %s21, 0
      %s24 = sadd.s32 %s23, 1
      %s25 = scalar_select %p22, %s23, %s24
      %p28 = pneg %p22
      %p29 = scmp.eq.s32.totalorder %s13, 1
      %p30 = por %p28, %p29
      %p31 = scmp.ne.s32.totalorder %s23, %s26
      %p32 = scmp.eq.s32.totalorder %s13, 0
      %p33 = por %p31, %p32
      %p34 = scmp.ne.s32.totalorder %s23, %s26
      %p35 = scmp.eq.s32.totalorder %s18, 1
      %p36 = por %p34, %p35
      %p37 = scmp.ne.s32.totalorder %s26, %s27
      %p38 = scmp.eq.s32.totalorder %s18, 0
      %p39 = por %p37, %p38
      %p40 = scmp.ne.s32.totalorder %s26, %s27
      %p41 = scmp.eq.s32.totalorder %s19, 1
      %p42 = por %p40, %p41
      %p44 = scmp.ne.s32.totalorder %s27, %s43
      %p45 = scmp.eq.s32.totalorder %s19, 0
      %p46 = por %p44, %p45
      %s48 = sadd.s32 %s47, 1
      %p51 = scmp.eq.s32.totalorder %s13, 1
      %p52 = scmp.ne.s32.totalorder %s47, %s49
      %p53 = scmp.eq.s32.totalorder %s13, 0
      %p54 = por %p52, %p53
      %p55 = scmp.ne.s32.totalorder %s47, %s49
      %p56 = scmp.eq.s32.totalorder %s18, 1
      %p57 = por %p55, %p56
      %p58 = scmp.ne.s32.totalorder %s49, %s50
      %p59 = scmp.eq.s32.totalorder %s18, 0
      %p60 = por %p58, %p59
      %p61 = scmp.ne.s32.totalorder %s49, %s50
      %p62 = scmp.eq.s32.totalorder %s19, 1
      %p63 = por %p61, %p62
      %p65 = scmp.ne.s32.totalorder %s50, %s64
      %p66 = scmp.eq.s32.totalorder %s19, 0
      %p67 = por %p65, %p66
      %s69 = sadd.s32 %s68, 1
      %p72 = scmp.eq.s32.totalorder %s13, 1
      %p73 = scmp.ne.s32.totalorder %s68, %s70
      %p74 = scmp.eq.s32.totalorder %s13, 0
      %p75 = por %p73, %p74
      %p76 = scmp.ne.s32.totalorder %s68, %s70
      %p77 = scmp.eq.s32.totalorder %s18, 1
      %p78 = por %p76, %p77
      %p79 = scmp.ne.s32.totalorder %s70, %s71
      %p80 = scmp.eq.s32.totalorder %s18, 0
      %p81 = por %p79, %p80
      %p82 = scmp.ne.s32.totalorder %s70, %s71
      %p83 = scmp.eq.s32.totalorder %s19, 1
      %p84 = por %p82, %p83
      %p86 = scmp.ne.s32.totalorder %s71, %s85
      %p87 = scmp.eq.s32.totalorder %s19, 0
      %p88 = por %p86, %p87
      %s90 = sadd.s32 %s89, 1
      %p93 = scmp.eq.s32.totalorder %s13, 1
      %p94 = scmp.ne.s32.totalorder %s89, %s91
      %p95 = scmp.eq.s32.totalorder %s13, 0
      %p96 = por %p94, %p95
      %p97 = scmp.ne.s32.totalorder %s89, %s91
      %p98 = scmp.eq.s32.totalorder %s18, 1
      %p99 = por %p97, %p98
      %p100 = scmp.ne.s32.totalorder %s91, %s92
      %p101 = scmp.eq.s32.totalorder %s18, 0
      %p102 = por %p100, %p101
      %p103 = scmp.ne.s32.totalorder %s91, %s92
      %p104 = scmp.eq.s32.totalorder %s19, 1
      %p105 = por %p103, %p104
      %p107 = scmp.ne.s32.totalorder %s92, %s106
      %p108 = scmp.eq.s32.totalorder %s19, 0
      %p109 = por %p107, %p108
      %s110 = ssub.s32 %s13, %s20
      %p111 = scmp.eq.s32.totalorder %s110, 0
      %s113 = sadd.s32 %s112, 1
      %s114 = scalar_select %p111, %s112, %s113
      %p117 = pneg %p111
      %p118 = scmp.eq.s32.totalorder %s13, 1
      %p119 = por %p117, %p118
      %p120 = scmp.ne.s32.totalorder %s112, %s115
      %p121 = scmp.eq.s32.totalorder %s13, 0
      %p122 = por %p120, %p121
      %p123 = scmp.ne.s32.totalorder %s112, %s115
      %p124 = scmp.eq.s32.totalorder %s18, 1
      %p125 = por %p123, %p124
      %p126 = scmp.ne.s32.totalorder %s115, %s116
      %p127 = scmp.eq.s32.totalorder %s18, 0
      %p128 = por %p126, %p127
      %p129 = scmp.ne.s32.totalorder %s115, %s116
      %p130 = scmp.eq.s32.totalorder %s19, 1
      %p131 = por %p129, %p130
      %p133 = scmp.ne.s32.totalorder %s116, %s132
      %p134 = scmp.eq.s32.totalorder %s19, 0
      %p135 = por %p133, %p134
      %p136 = scmp.le.s32.totalorder 1, %s13
      %p137 = scmp.lt.s32.totalorder %s13, 3
      %p138 = pnand %p136, %p137
      %p139 = pneg %p138
      // Predicated region
      $region9: #{tpu_custom_call.1} parent=5 // pred_check
        _
      $region10: #{tpu_custom_call.1} parent=5 // pred_check_branch
        %141 = sbr.rel (%p138) target = $region12
      $region11: #{tpu_custom_call.1} parent=5 // pred_region
        %s142 = ssub.s32 %s13, 1
        // Predicated region
        $region13: #{tpu_custom_call.1} parent=11 // pred_check
          %p143 = pneg %p60
        $region14: #{tpu_custom_call.1} parent=11 // pred_check_branch
          %145 = sbr.rel (%p143) target = $region16
        $region15: #{tpu_custom_call.1} parent=11 // pred_region
          _
        $region16: #{tpu_custom_call.1} parent=11 // pred_fallthru
          _
        // Predicated region
        $region17: #{tpu_custom_call.1} parent=11 // pred_check
          %p146 = pneg %p81
        $region18: #{tpu_custom_call.1} parent=11 // pred_check_branch
          %148 = sbr.rel (%p146) target = $region20
        $region19: #{tpu_custom_call.1} parent=11 // pred_region
          _
        $region20: #{tpu_custom_call.1} parent=11 // pred_fallthru
          _
        // Predicated region
        $region21: #{tpu_custom_call.1} parent=11 // pred_check
          %p149 = pneg %p102
        $region22: #{tpu_custom_call.1} parent=11 // pred_check_branch
          %151 = sbr.rel (%p149) target = $region24
        $region23: #{tpu_custom_call.1} parent=11 // pred_region
          _
        $region24: #{tpu_custom_call.1} parent=11 // pred_fallthru
          _
      $region12: #{tpu_custom_call.1} parent=5 // pred_fallthru
        _
      %p152 = scmp.lt.s32.totalorder %s13, 2
      // Predicated region
      $region25: #{tpu_custom_call.1} parent=5 // pred_check
        %p153 = pneg %p152
      $region26: #{tpu_custom_call.1} parent=5 // pred_check_branch
        %155 = sbr.rel (%p153) target = $region28
      $region27: #{tpu_custom_call.1} parent=5 // pred_region
        // Predicated region
        $region29: #{tpu_custom_call.1} parent=27 // pred_check
          %p156 = pneg %p33
        $region30: #{tpu_custom_call.1} parent=27 // pred_check_branch
          %158 = sbr.rel (%p156) target = $region32
        $region31: #{tpu_custom_call.1} parent=27 // pred_region
          %p159 = scmp.lt.s32.totalorder %s13, 1
          %s160 = scalar_select %p159, %s13, 1
          %s161 = smul.addr %s160, 8
          %s162 = scalar_lea.vmem %s0, %s161
        $region32: #{tpu_custom_call.1} parent=27 // pred_fallthru
          _
      $region28: #{tpu_custom_call.1} parent=5 // pred_fallthru
        _
      %p163 = scmp.le.s32.totalorder 1, %s13
      %p164 = scmp.lt.s32.totalorder %s13, 3
      %p165 = pnand %p163, %p164
      %p166 = pneg %p165
      // Predicated region
      $region33: #{tpu_custom_call.1} parent=5 // pred_check
        _
      $region34: #{tpu_custom_call.1} parent=5 // pred_check_branch
        %168 = sbr.rel (%p165) target = $region36
      $region35: #{tpu_custom_call.1} parent=5 // pred_region
        %s169 = ssub.s32 %s13, 1
        %p170 = scmp.lt.s32.totalorder %s18, 1
        %s171 = scalar_select %p170, %s18, 1
        %s172 = smul.addr %s171, 8
        %s173 = scalar_lea.vmem %s0, %s172
        %p174 = pneg %p39
        %p175 = pneg %p36
        %p176 = pneg %p60
        %p177 = pneg %p57
        %p178 = pneg %p81
        %p179 = pneg %p78
        %p180 = pneg %p102
        %p181 = pneg %p99
        %p182 = pneg %p128
        %p183 = pneg %p125
        %s184 = sand.u32 %s115, 1
        %s185 = scalar_lea.sflag [#allocation3], %s184
        %s186 = sand.u32 %s115, 1
        %s187 = smul.addr %s186, 8
        %s188 = scalar_lea.vmem [#allocation2], %s187
        %p189 = scmp.lt.s32.totalorder %s18, 1
        %s190 = scalar_select %p189, %s18, 1
        %s191 = smul.addr %s190, 8
        %s192 = scalar_lea.vmem %s0, %s191
        %v193 = vld [vmem:[%s192] sm:$0xff]
        %v194 = vld [vmem:[%s1] sm:$0xff]
        %vm195 = vcmask 64512
        %v197 = vsel %vm195, %v193, 0
        %199 = vmatprep.subr.mxu0 0.0
        %200 = vmatpush1.msra.mxu0 0.0
        %201 = vmatprep.subr.mxu0 0.0
        %202 = vmatpush1.msra.mxu0 0.0
        %203 = vmatprep.subr.mxu0 0.0
        %204 = vmatpush1.msra.mxu0 0.0
        %205 = vmatprep.subr.mxu0 0.0
        %206 = vmatpush1.msra.mxu0 0.0
        %207 = vmatprep.subr.mxu0 0.0
        %208 = vmatpush1.msra.mxu0 0.0
        %209 = vmatprep.subr.mxu0 0.0
        %210 = vmatpush1.msra.mxu0 0.0
        %211 = vmatprep.subr.mxu0 0.0
        %212 = vmatpush1.msra.mxu0 0.0
        %213 = vmatprep.subr.mxu0 0.0
        %214 = vmatpush1.msra.mxu0 0.0
        %215 = vmatprep.subr.mxu0 0.0
        %216 = vmatpush1.msra.mxu0 0.0
        %217 = vmatprep.subr.mxu0 0.0
        %218 = vmatpush1.msra.mxu0 0.0
        %219 = vmatprep.subr.mxu0 0.0
        %220 = vmatpush1.msra.mxu0 0.0
        %221 = vmatprep.subr.mxu0 0.0
        %222 = vmatpush1.msra.mxu0 0.0
        %223 = vmatprep.subr.mxu0 0.0
        %224 = vmatpush1.msra.mxu0 0.0
        %225 = vmatprep.subr.mxu0 0.0
        %226 = vmatpush1.msra.mxu0 0.0
        %227 = vmatprep.subr.mxu0 0.0
        %228 = vmatpush1.msra.mxu0 0.0
        %229 = vmatprep.subr.mxu0 0.0
        %v230 = vand.u32 %v194, 4294901760
        %231 = vmatpush1.msra.mxu0 %v230
        %232 = vmatprep.subr.mxu0 0.0
        %233 = vmatpush2.msra.mxu0 0.0
        %234 = vmatprep.subr.mxu0 0.0
        %235 = vmatpush2.msra.mxu0 0.0
        %236 = vmatprep.subr.mxu0 0.0
        %237 = vmatpush2.msra.mxu0 0.0
        %238 = vmatprep.subr.mxu0 0.0
        %239 = vmatpush2.msra.mxu0 0.0
        %240 = vmatprep.subr.mxu0 0.0
        %241 = vmatpush2.msra.mxu0 0.0
        %242 = vmatprep.subr.mxu0 0.0
        %243 = vmatpush2.msra.mxu0 0.0
        %244 = vmatprep.subr.mxu0 0.0
        %245 = vmatpush2.msra.mxu0 0.0
        %246 = vmatprep.subr.mxu0 0.0
        %247 = vmatpush2.msra.mxu0 0.0
        %248 = vmatprep.subr.mxu0 0.0
        %249 = vmatpush2.msra.mxu0 0.0
        %250 = vmatprep.subr.mxu0 0.0
        %251 = vmatpush2.msra.mxu0 0.0
        %252 = vmatprep.subr.mxu0 0.0
        %253 = vmatpush2.msra.mxu0 0.0
        %254 = vmatprep.subr.mxu0 0.0
        %255 = vmatpush2.msra.mxu0 0.0
        %256 = vmatprep.subr.mxu0 0.0
        %257 = vmatpush2.msra.mxu0 0.0
        %258 = vmatprep.subr.mxu0 0.0
        %259 = vmatpush2.msra.mxu0 0.0
        %260 = vmatprep.subr.mxu0 0.0
        %261 = vmatpush2.msra.mxu0 0.0
        %262 = vmatprep.subr.mxu0 0.0
        %263 = vmatpush2.msra.mxu0 0.0
        %264 = vmatprep.mubr.f32.mxu0 0.0
        %v265 = vand.u32 %v197, 4294901760
        %v266 = vsub.f32 %v197, %v265
        %v267 = vand.u32 %v266, 4294901760
        %v268 = vsub.f32 %v266, %v267
        %v269 = vand.u32 %v268, 4294901760
        %270 = vmatmul.mubr.f32.gmra.mxu0 %v269
        %v271 = vpop.f32.mrf.mxu0
        %v272 = vadd.f32 0.0, %v271
        %v273 = vpop.f32.mrf.mxu0
        %274 = vdwg.mxu0
        %275 = vmatprep.subr.mxu0 0.0
        %276 = vmatpush1.msra.mxu0 0.0
        %277 = vmatprep.subr.mxu0 0.0
        %278 = vmatpush1.msra.mxu0 0.0
        %279 = vmatprep.subr.mxu0 0.0
        %280 = vmatpush1.msra.mxu0 0.0
        %281 = vmatprep.subr.mxu0 0.0
        %282 = vmatpush1.msra.mxu0 0.0
        %283 = vmatprep.subr.mxu0 0.0
        %284 = vmatpush1.msra.mxu0 0.0
        %285 = vmatprep.subr.mxu0 0.0
        %286 = vmatpush1.msra.mxu0 0.0
        %287 = vmatprep.subr.mxu0 0.0
        %288 = vmatpush1.msra.mxu0 0.0
        %289 = vmatprep.subr.mxu0 0.0
        %290 = vmatpush1.msra.mxu0 0.0
        %291 = vmatprep.subr.mxu0 0.0
        %292 = vmatpush1.msra.mxu0 0.0
        %293 = vmatprep.subr.mxu0 0.0
        %294 = vmatpush1.msra.mxu0 0.0
        %295 = vmatprep.subr.mxu0 0.0
        %296 = vmatpush1.msra.mxu0 0.0
        %297 = vmatprep.subr.mxu0 0.0
        %298 = vmatpush1.msra.mxu0 0.0
        %299 = vmatprep.subr.mxu0 0.0
        %300 = vmatpush1.msra.mxu0 0.0
        %301 = vmatprep.subr.mxu0 0.0
        %302 = vmatpush1.msra.mxu0 0.0
        %303 = vmatprep.subr.mxu0 0.0
        %304 = vmatpush1.msra.mxu0 0.0
        %305 = vmatprep.subr.mxu0 0.0
        %v306 = vand.u32 %v194, 4294901760
        %v307 = vsub.f32 %v194, %v306
        %v308 = vand.u32 %v307, 4294901760
        %v309 = vsub.f32 %v307, %v308
        %v310 = vand.u32 %v309, 4294901760
        %311 = vmatpush1.msra.mxu0 %v310
        %312 = vmatprep.subr.mxu0 0.0
        %313 = vmatpush2.msra.mxu0 0.0
        %314 = vmatprep.subr.mxu0 0.0
        %315 = vmatpush2.msra.mxu0 0.0
        %316 = vmatprep.subr.mxu0 0.0
        %317 = vmatpush2.msra.mxu0 0.0
        %318 = vmatprep.subr.mxu0 0.0
        %319 = vmatpush2.msra.mxu0 0.0
        %320 = vmatprep.subr.mxu0 0.0
        %321 = vmatpush2.msra.mxu0 0.0
        %322 = vmatprep.subr.mxu0 0.0
        %323 = vmatpush2.msra.mxu0 0.0
        %324 = vmatprep.subr.mxu0 0.0
        %325 = vmatpush2.msra.mxu0 0.0
        %326 = vmatprep.subr.mxu0 0.0
        %327 = vmatpush2.msra.mxu0 0.0
        %328 = vmatprep.subr.mxu0 0.0
        %329 = vmatpush2.msra.mxu0 0.0
        %330 = vmatprep.subr.mxu0 0.0
        %331 = vmatpush2.msra.mxu0 0.0
        %332 = vmatprep.subr.mxu0 0.0
        %333 = vmatpush2.msra.mxu0 0.0
        %334 = vmatprep.subr.mxu0 0.0
        %335 = vmatpush2.msra.mxu0 0.0
        %336 = vmatprep.subr.mxu0 0.0
        %337 = vmatpush2.msra.mxu0 0.0
        %338 = vmatprep.subr.mxu0 0.0
        %339 = vmatpush2.msra.mxu0 0.0
        %340 = vmatprep.subr.mxu0 0.0
        %341 = vmatpush2.msra.mxu0 0.0
        %342 = vmatprep.subr.mxu0 0.0
        %343 = vmatpush2.msra.mxu0 0.0
        %344 = vmatprep.mubr.f32.mxu0 0.0
        %v345 = vand.u32 %v197, 4294901760
        %346 = vmatmul.mubr.f32.gmra.mxu0 %v345
        %v347 = vpop.f32.mrf.mxu0
        %v348 = vadd.f32 %v272, %v347
        %v349 = vpop.f32.mrf.mxu0
        %350 = vdwg.mxu0
        %351 = vmatprep.subr.mxu0 0.0
        %352 = vmatpush1.msra.mxu0 0.0
        %353 = vmatprep.subr.mxu0 0.0
        %354 = vmatpush1.msra.mxu0 0.0
        %355 = vmatprep.subr.mxu0 0.0
        %356 = vmatpush1.msra.mxu0 0.0
        %357 = vmatprep.subr.mxu0 0.0
        %358 = vmatpush1.msra.mxu0 0.0
        %359 = vmatprep.subr.mxu0 0.0
        %360 = vmatpush1.msra.mxu0 0.0
        %361 = vmatprep.subr.mxu0 0.0
        %362 = vmatpush1.msra.mxu0 0.0
        %363 = vmatprep.subr.mxu0 0.0
        %364 = vmatpush1.msra.mxu0 0.0
        %365 = vmatprep.subr.mxu0 0.0
        %366 = vmatpush1.msra.mxu0 0.0
        %367 = vmatprep.subr.mxu0 0.0
        %368 = vmatpush1.msra.mxu0 0.0
        %369 = vmatprep.subr.mxu0 0.0
        %370 = vmatpush1.msra.mxu0 0.0
        %371 = vmatprep.subr.mxu0 0.0
        %372 = vmatpush1.msra.mxu0 0.0
        %373 = vmatprep.subr.mxu0 0.0
        %374 = vmatpush1.msra.mxu0 0.0
        %375 = vmatprep.subr.mxu0 0.0
        %376 = vmatpush1.msra.mxu0 0.0
        %377 = vmatprep.subr.mxu0 0.0
        %378 = vmatpush1.msra.mxu0 0.0
        %379 = vmatprep.subr.mxu0 0.0
        %380 = vmatpush1.msra.mxu0 0.0
        %381 = vmatprep.subr.mxu0 0.0
        %v382 = vand.u32 %v194, 4294901760
        %v383 = vsub.f32 %v194, %v382
        %384 = vmatpush1.msra.mxu0 %v383
        %385 = vmatprep.subr.mxu0 0.0
        %386 = vmatpush2.msra.mxu0 0.0
        %387 = vmatprep.subr.mxu0 0.0
        %388 = vmatpush2.msra.mxu0 0.0
        %389 = vmatprep.subr.mxu0 0.0
        %390 = vmatpush2.msra.mxu0 0.0
        %391 = vmatprep.subr.mxu0 0.0
        %392 = vmatpush2.msra.mxu0 0.0
        %393 = vmatprep.subr.mxu0 0.0
        %394 = vmatpush2.msra.mxu0 0.0
        %395 = vmatprep.subr.mxu0 0.0
        %396 = vmatpush2.msra.mxu0 0.0
        %397 = vmatprep.subr.mxu0 0.0
        %398 = vmatpush2.msra.mxu0 0.0
        %399 = vmatprep.subr.mxu0 0.0
        %400 = vmatpush2.msra.mxu0 0.0
        %401 = vmatprep.subr.mxu0 0.0
        %402 = vmatpush2.msra.mxu0 0.0
        %403 = vmatprep.subr.mxu0 0.0
        %404 = vmatpush2.msra.mxu0 0.0
        %405 = vmatprep.subr.mxu0 0.0
        %406 = vmatpush2.msra.mxu0 0.0
        %407 = vmatprep.subr.mxu0 0.0
        %408 = vmatpush2.msra.mxu0 0.0
        %409 = vmatprep.subr.mxu0 0.0
        %410 = vmatpush2.msra.mxu0 0.0
        %411 = vmatprep.subr.mxu0 0.0
        %412 = vmatpush2.msra.mxu0 0.0
        %413 = vmatprep.subr.mxu0 0.0
        %414 = vmatpush2.msra.mxu0 0.0
        %415 = vmatprep.subr.mxu0 0.0
        %416 = vmatpush2.msra.mxu0 0.0
        %417 = vmatprep.mubr.f32.mxu0 0.0
        %v418 = vand.u32 %v197, 4294901760
        %v419 = vsub.f32 %v197, %v418
        %420 = vmatmul.mubr.f32.gmra.mxu0 %v419
        %v421 = vpop.f32.mrf.mxu0
        %v422 = vadd.f32 %v348, %v421
        %v423 = vpop.f32.mrf.mxu0
        %424 = vdwg.mxu0
        %425 = vmatprep.subr.mxu0 0.0
        %426 = vmatpush1.msra.mxu0 0.0
        %427 = vmatprep.subr.mxu0 0.0
        %428 = vmatpush1.msra.mxu0 0.0
        %429 = vmatprep.subr.mxu0 0.0
        %430 = vmatpush1.msra.mxu0 0.0
        %431 = vmatprep.subr.mxu0 0.0
        %432 = vmatpush1.msra.mxu0 0.0
        %433 = vmatprep.subr.mxu0 0.0
        %434 = vmatpush1.msra.mxu0 0.0
        %435 = vmatprep.subr.mxu0 0.0
        %436 = vmatpush1.msra.mxu0 0.0
        %437 = vmatprep.subr.mxu0 0.0
        %438 = vmatpush1.msra.mxu0 0.0
        %439 = vmatprep.subr.mxu0 0.0
        %440 = vmatpush1.msra.mxu0 0.0
        %441 = vmatprep.subr.mxu0 0.0
        %442 = vmatpush1.msra.mxu0 0.0
        %443 = vmatprep.subr.mxu0 0.0
        %444 = vmatpush1.msra.mxu0 0.0
        %445 = vmatprep.subr.mxu0 0.0
        %446 = vmatpush1.msra.mxu0 0.0
        %447 = vmatprep.subr.mxu0 0.0
        %448 = vmatpush1.msra.mxu0 0.0
        %449 = vmatprep.subr.mxu0 0.0
        %450 = vmatpush1.msra.mxu0 0.0
        %451 = vmatprep.subr.mxu0 0.0
        %452 = vmatpush1.msra.mxu0 0.0
        %453 = vmatprep.subr.mxu0 0.0
        %454 = vmatpush1.msra.mxu0 0.0
        %455 = vmatprep.subr.mxu0 0.0
        %v456 = vand.u32 %v194, 4294901760
        %457 = vmatpush1.msra.mxu0 %v456
        %458 = vmatprep.subr.mxu0 0.0
        %459 = vmatpush2.msra.mxu0 0.0
        %460 = vmatprep.subr.mxu0 0.0
        %461 = vmatpush2.msra.mxu0 0.0
        %462 = vmatprep.subr.mxu0 0.0
        %463 = vmatpush2.msra.mxu0 0.0
        %464 = vmatprep.subr.mxu0 0.0
        %465 = vmatpush2.msra.mxu0 0.0
        %466 = vmatprep.subr.mxu0 0.0
        %467 = vmatpush2.msra.mxu0 0.0
        %468 = vmatprep.subr.mxu0 0.0
        %469 = vmatpush2.msra.mxu0 0.0
        %470 = vmatprep.subr.mxu0 0.0
        %471 = vmatpush2.msra.mxu0 0.0
        %472 = vmatprep.subr.mxu0 0.0
        %473 = vmatpush2.msra.mxu0 0.0
        %474 = vmatprep.subr.mxu0 0.0
        %475 = vmatpush2.msra.mxu0 0.0
        %476 = vmatprep.subr.mxu0 0.0
        %477 = vmatpush2.msra.mxu0 0.0
        %478 = vmatprep.subr.mxu0 0.0
        %479 = vmatpush2.msra.mxu0 0.0
        %480 = vmatprep.subr.mxu0 0.0
        %481 = vmatpush2.msra.mxu0 0.0
        %482 = vmatprep.subr.mxu0 0.0
        %483 = vmatpush2.msra.mxu0 0.0
        %484 = vmatprep.subr.mxu0 0.0
        %485 = vmatpush2.msra.mxu0 0.0
        %486 = vmatprep.subr.mxu0 0.0
        %487 = vmatpush2.msra.mxu0 0.0
        %488 = vmatprep.subr.mxu0 0.0
        %489 = vmatpush2.msra.mxu0 0.0
        %490 = vmatprep.mubr.f32.mxu0 0.0
        %v491 = vand.u32 %v197, 4294901760
        %v492 = vsub.f32 %v197, %v491
        %v493 = vand.u32 %v492, 4294901760
        %494 = vmatmul.mubr.f32.gmra.mxu0 %v493
        %v495 = vpop.f32.mrf.mxu0
        %v496 = vadd.f32 %v422, %v495
        %v497 = vpop.f32.mrf.mxu0
        %498 = vdwg.mxu0
        %499 = vmatprep.subr.mxu0 0.0
        %500 = vmatpush1.msra.mxu0 0.0
        %501 = vmatprep.subr.mxu0 0.0
        %502 = vmatpush1.msra.mxu0 0.0
        %503 = vmatprep.subr.mxu0 0.0
        %504 = vmatpush1.msra.mxu0 0.0
        %505 = vmatprep.subr.mxu0 0.0
        %506 = vmatpush1.msra.mxu0 0.0
        %507 = vmatprep.subr.mxu0 0.0
        %508 = vmatpush1.msra.mxu0 0.0
        %509 = vmatprep.subr.mxu0 0.0
        %510 = vmatpush1.msra.mxu0 0.0
        %511 = vmatprep.subr.mxu0 0.0
        %512 = vmatpush1.msra.mxu0 0.0
        %513 = vmatprep.subr.mxu0 0.0
        %514 = vmatpush1.msra.mxu0 0.0
        %515 = vmatprep.subr.mxu0 0.0
        %516 = vmatpush1.msra.mxu0 0.0
        %517 = vmatprep.subr.mxu0 0.0
        %518 = vmatpush1.msra.mxu0 0.0
        %519 = vmatprep.subr.mxu0 0.0
        %520 = vmatpush1.msra.mxu0 0.0
        %521 = vmatprep.subr.mxu0 0.0
        %522 = vmatpush1.msra.mxu0 0.0
        %523 = vmatprep.subr.mxu0 0.0
        %524 = vmatpush1.msra.mxu0 0.0
        %525 = vmatprep.subr.mxu0 0.0
        %526 = vmatpush1.msra.mxu0 0.0
        %527 = vmatprep.subr.mxu0 0.0
        %528 = vmatpush1.msra.mxu0 0.0
        %529 = vmatprep.subr.mxu0 0.0
        %v530 = vand.u32 %v194, 4294901760
        %v531 = vsub.f32 %v194, %v530
        %v532 = vand.u32 %v531, 4294901760
        %533 = vmatpush1.msra.mxu0 %v532
        %534 = vmatprep.subr.mxu0 0.0
        %535 = vmatpush2.msra.mxu0 0.0
        %536 = vmatprep.subr.mxu0 0.0
        %537 = vmatpush2.msra.mxu0 0.0
        %538 = vmatprep.subr.mxu0 0.0
        %539 = vmatpush2.msra.mxu0 0.0
        %540 = vmatprep.subr.mxu0 0.0
        %541 = vmatpush2.msra.mxu0 0.0
        %542 = vmatprep.subr.mxu0 0.0
        %543 = vmatpush2.msra.mxu0 0.0
        %544 = vmatprep.subr.mxu0 0.0
        %545 = vmatpush2.msra.mxu0 0.0
        %546 = vmatprep.subr.mxu0 0.0
        %547 = vmatpush2.msra.mxu0 0.0
        %548 = vmatprep.subr.mxu0 0.0
        %549 = vmatpush2.msra.mxu0 0.0
        %550 = vmatprep.subr.mxu0 0.0
        %551 = vmatpush2.msra.mxu0 0.0
        %552 = vmatprep.subr.mxu0 0.0
        %553 = vmatpush2.msra.mxu0 0.0
        %554 = vmatprep.subr.mxu0 0.0
        %555 = vmatpush2.msra.mxu0 0.0
        %556 = vmatprep.subr.mxu0 0.0
        %557 = vmatpush2.msra.mxu0 0.0
        %558 = vmatprep.subr.mxu0 0.0
        %559 = vmatpush2.msra.mxu0 0.0
        %560 = vmatprep.subr.mxu0 0.0
        %561 = vmatpush2.msra.mxu0 0.0
        %562 = vmatprep.subr.mxu0 0.0
        %563 = vmatpush2.msra.mxu0 0.0
        %564 = vmatprep.subr.mxu0 0.0
        %565 = vmatpush2.msra.mxu0 0.0
        %566 = vmatprep.mubr.f32.mxu0 0.0
        %v567 = vand.u32 %v197, 4294901760
        %568 = vmatmul.mubr.f32.gmra.mxu0 %v567
        %v569 = vpop.f32.mrf.mxu0
        %v570 = vadd.f32 %v496, %v569
        %v571 = vpop.f32.mrf.mxu0
        %572 = vdwg.mxu0
        %573 = vmatprep.subr.mxu0 0.0
        %574 = vmatpush1.msra.mxu0 0.0
        %575 = vmatprep.subr.mxu0 0.0
        %576 = vmatpush1.msra.mxu0 0.0
        %577 = vmatprep.subr.mxu0 0.0
        %578 = vmatpush1.msra.mxu0 0.0
        %579 = vmatprep.subr.mxu0 0.0
        %580 = vmatpush1.msra.mxu0 0.0
        %581 = vmatprep.subr.mxu0 0.0
        %582 = vmatpush1.msra.mxu0 0.0
        %583 = vmatprep.subr.mxu0 0.0
        %584 = vmatpush1.msra.mxu0 0.0
        %585 = vmatprep.subr.mxu0 0.0
        %586 = vmatpush1.msra.mxu0 0.0
        %587 = vmatprep.subr.mxu0 0.0
        %588 = vmatpush1.msra.mxu0 0.0
        %589 = vmatprep.subr.mxu0 0.0
        %590 = vmatpush1.msra.mxu0 0.0
        %591 = vmatprep.subr.mxu0 0.0
        %592 = vmatpush1.msra.mxu0 0.0
        %593 = vmatprep.subr.mxu0 0.0
        %594 = vmatpush1.msra.mxu0 0.0
        %595 = vmatprep.subr.mxu0 0.0
        %596 = vmatpush1.msra.mxu0 0.0
        %597 = vmatprep.subr.mxu0 0.0
        %598 = vmatpush1.msra.mxu0 0.0
        %599 = vmatprep.subr.mxu0 0.0
        %600 = vmatpush1.msra.mxu0 0.0
        %601 = vmatprep.subr.mxu0 0.0
        %602 = vmatpush1.msra.mxu0 0.0
        %603 = vmatprep.subr.mxu0 0.0
        %v604 = vand.u32 %v194, 4294901760
        %605 = vmatpush1.msra.mxu0 %v604
        %606 = vmatprep.subr.mxu0 0.0
        %607 = vmatpush2.msra.mxu0 0.0
        %608 = vmatprep.subr.mxu0 0.0
        %609 = vmatpush2.msra.mxu0 0.0
        %610 = vmatprep.subr.mxu0 0.0
        %611 = vmatpush2.msra.mxu0 0.0
        %612 = vmatprep.subr.mxu0 0.0
        %613 = vmatpush2.msra.mxu0 0.0
        %614 = vmatprep.subr.mxu0 0.0
        %615 = vmatpush2.msra.mxu0 0.0
        %616 = vmatprep.subr.mxu0 0.0
        %617 = vmatpush2.msra.mxu0 0.0
        %618 = vmatprep.subr.mxu0 0.0
        %619 = vmatpush2.msra.mxu0 0.0
        %620 = vmatprep.subr.mxu0 0.0
        %621 = vmatpush2.msra.mxu0 0.0
        %622 = vmatprep.subr.mxu0 0.0
        %623 = vmatpush2.msra.mxu0 0.0
        %624 = vmatprep.subr.mxu0 0.0
        %625 = vmatpush2.msra.mxu0 0.0
        %626 = vmatprep.subr.mxu0 0.0
        %627 = vmatpush2.msra.mxu0 0.0
        %628 = vmatprep.subr.mxu0 0.0
        %629 = vmatpush2.msra.mxu0 0.0
        %630 = vmatprep.subr.mxu0 0.0
        %631 = vmatpush2.msra.mxu0 0.0
        %632 = vmatprep.subr.mxu0 0.0
        %633 = vmatpush2.msra.mxu0 0.0
        %634 = vmatprep.subr.mxu0 0.0
        %635 = vmatpush2.msra.mxu0 0.0
        %636 = vmatprep.subr.mxu0 0.0
        %637 = vmatpush2.msra.mxu0 0.0
        %638 = vmatprep.mubr.f32.mxu0 0.0
        %v639 = vand.u32 %v197, 4294901760
        %640 = vmatmul.mubr.f32.gmra.mxu0 %v639
        %v641 = vpop.f32.mrf.mxu0
        %v642 = vadd.f32 %v570, %v641
        %v643 = vpop.f32.mrf.mxu0
        %644 = vdwg.mxu0
        %v645 = vld [vmem:[%s2] sm:$0x1]
        %v647 = vlaneseq
        %v648 = vshrl.u32 %v647, 7
        %v649 = vsub.s32 0, %v648
        %v650 = vrot.slane %v645, %v649
        %v652 = vmul.f32 %v642, %v650
        %v653 = vld [vmem:[%s3] sm:$0x1]
        %v655 = vlaneseq
        %v656 = vshrl.u32 %v655, 7
        %v657 = vsub.s32 0, %v656
        %v658 = vrot.slane %v653, %v657
        %v660 = vadd.f32 %v652, %v658
        %v661 = vand.u32 2147483647, %v660
        %vm662 = vcmp.le.f32.partialorder %v661, 0.7853982
        %vm663 = vcmp.lt.s32.totalorder %v660, 0
        %v664 = vand.u32 %v660, 2139095040
        %v665 = vshrl.u32 %v664, 23
        %v666 = vsub.s32 %v665, 127
        %v667 = vand.u32 2147483647, %v660
        %v668 = vand.u32 %v667, 8388607
        %v669 = vor.u32 %v668, 8388608
        %v670 = vsub.s32 0, %v669
        %v671 = vadd.s32 %v666, 1
        %vm672 = vcmp.gt.s32.totalorder %v671, 0
        %v673 = vsel %vm672, %v671, 0
        %v674 = vshrl.u32 %v673, 5
        %v675 = vand.u32 %v673, 31
        %v676 = vsub.s32 32, %v675
        %v677 = vshrl.u32 683565275, %v676
        %v678 = vshll.u32 683565275, %v675
        %v679 = vshrl.u32 2475754826, %v676
        %v680 = vor.u32 %v678, %v679
        %v681 = vshll.u32 2475754826, %v675
        %v682 = vshrl.u32 2131351028, %v676
        %v683 = vor.u32 %v681, %v682
        %v684 = vshll.u32 2131351028, %v675
        %v685 = vshrl.u32 2102212464, %v676
        %v686 = vor.u32 %v684, %v685
        %v687 = vshll.u32 2102212464, %v675
        %v688 = vshrl.u32 920167782, %v676
        %v689 = vor.u32 %v687, %v688
        %v690 = vshll.u32 920167782, %v675
        %v691 = vshrl.u32 1326507024, %v676
        %v692 = vor.u32 %v690, %v691
        %vm693 = vcmp.lt.s32.totalorder %v674, 1
        %vm694 = vcmp.lt.s32.totalorder %v674, 2
        %vm695 = vcmp.lt.s32.totalorder %v674, 3
        %vm696 = vcmp.lt.s32.totalorder %v674, 4
        %v697 = vsel %vm693, %v677, %v680
        %v698 = vsel %vm696, %v686, 2102212464
        %v699 = vsel %vm695, %v683, %v698
        %v700 = vsel %vm694, %v697, %v699
        %v701 = vsel %vm693, %v680, %v683
        %v702 = vsel %vm696, %v689, 920167782
        %v703 = vsel %vm695, %v686, %v702
        %v704 = vsel %vm694, %v701, %v703
        %v705 = vsel %vm693, %v683, %v686
        %v706 = vsel %vm696, %v692, 1326507024
        %v707 = vsel %vm695, %v689, %v706
        %v708 = vsel %vm694, %v705, %v707
        %v709 = vshll.u32 %v669, 8
        %v710 = vmul.u32.u64.compose %v709, %v708
        %v711 = vextract.low.u32 %v710
        %v712 = vextract.high.u32 %v710
        %v713 = vmul.u32.u64.compose %v709, %v704
        %v714 = vextract.low.u32 %v713
        %v715 = vextract.high.u32 %v713
        %v716 = vmul.u32 %v709, %v700
        %v717 = vadd.s32 %v712, %v714
        %vm718 = vc.u32 %v712, %v714
        %v719 = vadd.s32 %v715, 1
        %v720 = vsel %vm718, %v719, %v715
        %v721 = vadd.s32 %v716, %v720
        %v722 = vadd.s32 %v721, 536870912
        %v723 = vshrl.u32 %v722, 30
        %v724 = vshll.u32 %v723, 30
        %v725 = vsub.s32 %v721, %v724
        %vm726 = vcmp.lt.s32.totalorder %v725, 0
        %v727 = vsub.s32 0, %v725
        %v728 = vsel %vm726, %v727, %v725
        %v729 = vclz %v728
        %v730 = vsub.s32 %v729, 2
        %vm731 = vcmp.gt.s32.totalorder 0, %v730
        %v732 = vsel %vm731, 0, %v730
        %v733 = vsub.s32 32, %v732
        %v734 = vshll.u32 %v725, %v732
        %v735 = vshrl.u32 %v717, %v733
        %v736 = vor.u32 %v734, %v735
        %v737 = vsub.s32 4294967266, %v732
        %v738 = vadd.s32 %v737, 127
        %v739 = vshll.u32 %v738, 23
        %v740 = vor.u32 4788187, %v739
        %v741 = vand.u32 2147483647, %v740
        %v743 = vcvt.s32.f32 %v736
        %v744 = vmul.f32 %v743, %v741
        %v745 = vxor.u32 %v744, 2147483648
        %v746 = vsel %vm663, %v745, %v744
        %v747 = vsub.s32 4, %v723
        %v748 = vsel %vm663, %v747, %v723
        %v749 = vsel %vm662, %v660, %v746
        %v750 = vsel %vm662, 0, %v748
        %v751 = vcosq.f32.pop %v749
        %v752 = vsinq.f32.pop %v749
        %vm753 = vweird.f32 %v660
        %v754 = vadd.s32 %v750, 3
        %v755 = vand.u32 %v754, 3
        %vm756 = vcmp.lt.s32.totalorder %v755, 2
        %vm757 = vcmp.eq.s32.totalorder %v755, 0
        %v758 = vxor.u32 %v752, 2147483648
        %v759 = vsel %vm757, %v751, %v758
        %vm760 = vcmp.eq.s32.totalorder %v755, 2
        %v761 = vxor.u32 %v751, 2147483648
        %v762 = vsel %vm760, %v761, %v752
        %v763 = vsel %vm756, %v759, %v762
        %v764 = vsel %vm753, nan, %v763
        %765 = vst [vmem:[%s188] sm:$0xff] %v764
        %s766 = sand.u32 %s115, 1
        %s767 = scalar_lea.sflag [#allocation3], %s766
        %s768 = sand.u32 %s115, 1
        %s769 = smul.addr %s768, 8
        %s770 = scalar_lea.vmem [#allocation2], %s769
        // Predicated region
        $region37: #{tpu_custom_call.1} parent=35 // pred_check
          %p771 = pneg %p125
        $region38: #{tpu_custom_call.1} parent=35 // pred_check_branch
          %773 = sbr.rel (%p771) target = $region40
        $region39: #{tpu_custom_call.1} parent=35 // pred_region
          %s775 = ssub.s32 128, 128
          %776 = vsyncadd %s767, %s775
          %s777 = smul.addr %s18, 128
          %s778 = scalar_lea.hbm %s4, %s777
          %s780 = sshll.u32 %s770, 4
          %s781 = int_to_ptr.vmem [resolvable:$true] %s780
          %783 = dma.vmem_to_hbm [thread:$0]  %s781, 128, %s778, %s767
        $region40: #{tpu_custom_call.1} parent=35 // pred_fallthru
          _
      $region36: #{tpu_custom_call.1} parent=5 // pred_fallthru
        _
      %p784 = scmp.le.s32.totalorder 2, %s13
      // Predicated region
      $region41: #{tpu_custom_call.1} parent=5 // pred_check
        %p785 = pneg %p784
      $region42: #{tpu_custom_call.1} parent=5 // pred_check_branch
        %787 = sbr.rel (%p785) target = $region44
      $region43: #{tpu_custom_call.1} parent=5 // pred_region
        %s788 = ssub.s32 %s13, 2
        // Predicated region
        $region45: #{tpu_custom_call.1} parent=43 // pred_check
          %p789 = pneg %p131
        $region46: #{tpu_custom_call.1} parent=43 // pred_check_branch
          %791 = sbr.rel (%p789) target = $region48
        $region47: #{tpu_custom_call.1} parent=43 // pred_region
          %s792 = sand.u32 %s116, 1
          %s793 = scalar_lea.sflag [#allocation3], %s792
          %s794 = sand.u32 %s116, 1
          %s795 = smul.addr %s794, 8
          %s796 = scalar_lea.vmem [#allocation2], %s795
          %797 = dma.done %s793, 128
        $region48: #{tpu_custom_call.1} parent=43 // pred_fallthru
          _
      $region44: #{tpu_custom_call.1} parent=5 // pred_fallthru
        _
    $region6: #{tpu_custom_call.1} parent=1 // loop_footer
      %s17 = sadd.s32 1, %s13
    $region7: #{tpu_custom_call.1} parent=1 // loop_footer_branch
      %12 = sbr.rel target = $region3
    $region8: #{tpu_custom_call.1} parent=1 // loop_exit
      _
    %798 = vsyncpa [#allocation3], 1
    %s799 = scalar_lea.sflag [#allocation3], 1
    %800 = vsyncpa %s799, 1

</llo_original>
